<compile_context>
chip_gen: v7x
topology: tpu7x:2x2x1
jax: 0.10.0
libtpu: 0.0.40
codegen_flags: <defaults>
</compile_context>

<pallas_src>
import functools

import jax
import jax.numpy as jnp
from jax.experimental import pallas as pl
from jax.experimental.pallas import tpu as pltpu

_NEG_SLOPE = 0.01   # F.leaky_relu default negative_slope
_BN_EPS = 1e-5      # nn.BatchNorm1d default eps


# ------------------------------- Pallas kernel -------------------------------

def _policy_kernel(*refs, in_dim, hidden_dim, out_dim, sample,
                   want_probs, want_log_pi, want_reg, want_ent):
    i = 0
    x_ref = refs[i]; i += 1
    p_ref = refs[i]; i += 1
    g_ref = None
    if sample:
        g_ref = refs[i]; i += 1
    main_ref = refs[i]; i += 1
    want_small = want_log_pi or want_reg or want_ent
    small_ref = refs[i] if want_small else None

    dot = lambda a, b: jnp.dot(a, b, preferred_element_type=jnp.float32)
    lrelu = lambda h: jnp.maximum(h, _NEG_SLOPE * h)

    # Static row offsets inside the packed parameter slab (zero-cost static slices).
    r1 = 0
    rb1 = r1 + in_dim
    r2 = rb1 + 1
    rb2 = r2 + hidden_dim
    r3 = rb2 + 1
    rb3 = r3 + hidden_dim

    w1 = p_ref[r1:rb1, 0:hidden_dim]          # BN already folded into these
    b1 = p_ref[rb1:rb1 + 1, 0:hidden_dim]
    w2 = p_ref[r2:rb2, 0:hidden_dim]
    b2 = p_ref[rb2:rb2 + 1, 0:hidden_dim]
    w3 = p_ref[r3:rb3, 0:out_dim]
    b3 = p_ref[rb3:rb3 + 1, 0:out_dim]

    # ---- BasePolicy.forward (BatchNorm folded into fc1) ----
    x = x_ref[...]
    h1 = lrelu(dot(x, w1) + b1)               # fc1 + leaky_relu
    h2 = lrelu(dot(h1, w2) + b2)              # fc2 + leaky_relu
    logits = dot(h2, w3) + b3                 # fc3  ("out")
    batch = logits.shape[0]

    # ---- DiscretePolicy.forward ----
    need_logp = want_log_pi or want_ent
    need_probs = want_probs or want_ent
    probs = log_probs = None
    if need_logp or need_probs:
        z = logits - jnp.max(logits, axis=1, keepdims=True)     # stable softmax
        ez = jnp.exp(z)
        se = jnp.sum(ez, axis=1, keepdims=True)
        if need_probs:
            probs = ez / se                                     # F.softmax
        if need_logp:
            log_probs = z - jnp.log(se)                         # F.log_softmax

    # Action selection.  sample=True: Gumbel-max on logits (== torch.multinomial on probs);
    # sample=False: onehot_from_logits -> argmax(probs) == argmax(logits).
    score = logits + g_ref[...] if sample else logits
    col = jax.lax.broadcasted_iota(jnp.int32, (batch, out_dim), 1)
    row_max = jnp.max(score, axis=1, keepdims=True)
    sel = jnp.min(jnp.where(score >= row_max, col, out_dim), axis=1, keepdims=True)
    act = (col == sel).astype(jnp.float32)    # single-hot even on exact ties

    if want_probs:
        main_ref[...] = jnp.concatenate([act, probs], axis=1)
    else:
        main_ref[...] = act

    if want_small:
        if want_log_pi:
            # log_probs.gather(1, int_act): one-hot dot == gather at the chosen index
            logpi_col = jnp.sum(act * log_probs, axis=1, keepdims=True)
        else:
            logpi_col = jnp.zeros((batch, 1), jnp.float32)
        if want_ent:
            ent_col = jnp.broadcast_to(
                jnp.mean(-jnp.sum(probs * log_probs, axis=1, keepdims=True),
                         axis=0, keepdims=True), (batch, 1))
        else:
            ent_col = jnp.zeros((batch, 1), jnp.float32)
        if want_reg:
            reg_col = jnp.broadcast_to(
                jnp.mean(jnp.mean(logits * logits, axis=1, keepdims=True),
                         axis=0, keepdims=True), (batch, 1))
        else:
            reg_col = jnp.zeros((batch, 1), jnp.float32)
        small_ref[...] = jnp.concatenate([logpi_col, ent_col, reg_col], axis=1)


# ----------------------------- params & forward ------------------------------

def init_params(key, input_dim, hidden_dim, out_dim):
    """Builds all parameters and packs them ONCE into a single (rows, 128) VMEM slab."""
    assert input_dim <= 128 and hidden_dim <= 128 and out_dim <= 128, \
        "single-slab packing assumes all feature dims fit in one 128-lane tile"
    ks = jax.random.split(key, 5)

    def linear(k, fan_in, fan_out):
        kw, kb = jax.random.split(k)
        bound = 1.0 / (fan_in ** 0.5)
        w = jax.random.uniform(kw, (fan_in, fan_out), jnp.float32, -bound, bound)
        b = jax.random.uniform(kb, (1, fan_out), jnp.float32, -bound, bound)
        return w, b

    w1, b1 = linear(ks[0], input_dim, hidden_dim)
    w2, b2 = linear(ks[1], hidden_dim, hidden_dim)
    w3, b3 = linear(ks[2], hidden_dim, out_dim)

    # BatchNorm1d(input_dim, affine=False) eval-mode running stats, folded into fc1.
    # TODO(synk): training-mode BatchNorm (batch statistics + running-stat update) not implemented.
    mean = 0.1 * jax.random.normal(ks[3], (input_dim,), jnp.float32)
    var = 1.0 + 0.1 * jax.random.uniform(ks[4], (input_dim,), jnp.float32)
    inv_std = 1.0 / jnp.sqrt(var + _BN_EPS)
    w1f = w1 * inv_std[:, None]
    b1f = b1 - (mean * inv_std) @ w1

    rows = input_dim + 1 + hidden_dim + 1 + hidden_dim + 1
    rows_padded = ((rows + 7) // 8) * 8
    slab = jnp.zeros((rows_padded, 128), jnp.float32)
    r = 0
    slab = slab.at[r:r + input_dim, 0:hidden_dim].set(w1f); r += input_dim
    slab = slab.at[r:r + 1, 0:hidden_dim].set(b1f); r += 1
    slab = slab.at[r:r + hidden_dim, 0:hidden_dim].set(w2); r += hidden_dim
    slab = slab.at[r:r + 1, 0:hidden_dim].set(b2); r += 1
    slab = slab.at[r:r + hidden_dim, 0:out_dim].set(w3); r += hidden_dim
    slab = slab.at[r:r + 1, 0:out_dim].set(b3); r += 1

    return {
        "slab": slab,
        "dims": (input_dim, hidden_dim, out_dim),
        # raw (unfolded) params kept only for the pure-JAX reference check
        "ref": dict(bn_mean=mean, bn_inv_std=inv_std, fc1_w=w1, fc1_b=b1,
                    fc2_w=w2, fc2_b=b2, fc3_w=w3, fc3_b=b3),
    }


def discrete_policy_forward(params, obs, key=None, *, sample=True,
                            return_all_probs=False, return_log_pi=False,
                            regularize=False, return_entropy=False):
    """Mirrors DiscretePolicy.forward; one fused pallas_call, outputs gated by the flags."""
    # TODO(synk): tuple (obs, onehot) inputs (onehot_dim > 0) are not wired; fold the concat
    #             into fc1 by splitting its weight when needed.
    obs = obs.astype(jnp.float32)
    batch = obs.shape[0]
    in_dim, hidden_dim, out_dim = params["dims"]
    slab = params["slab"]

    inputs = [obs, slab]
    if sample:
        if key is None:
            raise ValueError("sample=True requires a jax.random key")
        inputs.append(jax.random.gumbel(key, (batch, out_dim), jnp.float32))

    want_small = return_log_pi or regularize or return_entropy
    main_cols = 2 * out_dim if return_all_probs else out_dim
    out_shape = [jax.ShapeDtypeStruct((batch, main_cols), jnp.float32)]
    if want_small:
        out_shape.append(jax.ShapeDtypeStruct((batch, 3), jnp.float32))

    vmem = pl.BlockSpec(memory_space=pltpu.MemorySpace.VMEM)
    flops = 2 * batch * (in_dim * hidden_dim + hidden_dim * hidden_dim + hidden_dim * out_dim)
    in_bytes = int(obs.size) * 4 + int(slab.size) * 4 + (batch * out_dim * 4 if sample else 0)
    out_bytes = batch * main_cols * 4 + (batch * 3 * 4 if want_small else 0)
    cost = pl.CostEstimate(flops=flops,
                           transcendentals=batch * (out_dim + 2),
                           bytes_accessed=in_bytes + out_bytes)

    outs = pl.pallas_call(
        functools.partial(_policy_kernel, in_dim=in_dim, hidden_dim=hidden_dim,
                          out_dim=out_dim, sample=sample,
                          want_probs=return_all_probs, want_log_pi=return_log_pi,
                          want_reg=regularize, want_ent=return_entropy),
        out_shape=tuple(out_shape),
        in_specs=[vmem] * len(inputs),
        out_specs=tuple([vmem] * len(out_shape)),
        cost_estimate=cost,
    )(*inputs)

    main = outs[0]
    act = main[:, 0:out_dim]
    rets = [act]
    if return_all_probs:
        rets.append(main[:, out_dim:2 * out_dim])
    if want_small:
        small = outs[1]
    if return_log_pi:
        rets.append(small[:, 0:1])
    if regularize:
        rets.append([small[0, 2]])
    if return_entropy:
        rets.append(small[0, 1])
    return rets[0] if len(rets) == 1 else rets


# ------------------------------ reference & test ------------------------------

def _reference_forward(p, obs):
    """Pure-JAX reference of the BasePolicy/DiscretePolicy math (unfolded BN)."""
    lrelu = lambda h: jnp.where(h >= 0, h, _NEG_SLOPE * h)
    inp = (obs - p["bn_mean"]) * p["bn_inv_std"]
    h1 = lrelu(inp @ p["fc1_w"] + p["fc1_b"])
    h2 = lrelu(h1 @ p["fc2_w"] + p["fc2_b"])
    logits = h2 @ p["fc3_w"] + p["fc3_b"]
    return logits, jax.nn.softmax(logits, axis=1), jax.nn.log_softmax(logits, axis=1)


if __name__ == "__main__":
    INPUT_DIM, HIDDEN_DIM, OUT_DIM, BATCH = 32, 64, 9, 8   # BATCH=8 keeps sublanes aligned

    key = jax.random.PRNGKey(0)
    k_param, k_obs, k_samp = jax.random.split(key, 3)
    params = init_params(k_param, INPUT_DIM, HIDDEN_DIM, OUT_DIM)
    obs = jax.random.normal(k_obs, (BATCH, INPUT_DIM), jnp.float32)

    # Deterministic path (sample=False -> onehot_from_logits), all optional returns on.
    act, probs, log_pi, reg_list, ent = discrete_policy_forward(
        params, obs, sample=False, return_all_probs=True,
        return_log_pi=True, regularize=True, return_entropy=True)
    jax.block_until_ready((act, probs, log_pi, ent))

    logits_r, probs_r, logp_r = _reference_forward(params["ref"], obs)
    idx_r = jnp.argmax(logits_r, axis=1)
    assert act.shape == (BATCH, OUT_DIM) and probs.shape == (BATCH, OUT_DIM)
    assert log_pi.shape == (BATCH, 1)
    assert bool(jnp.allclose(jnp.sum(act, axis=1), 1.0))
    assert bool(jnp.all((act == 0.0) | (act == 1.0)))
    assert bool(jnp.array_equal(jnp.argmax(act, axis=1), idx_r))
    assert bool(jnp.allclose(probs, probs_r, atol=1e-4))
    assert bool(jnp.allclose(log_pi[:, 0], logp_r[jnp.arange(BATCH), idx_r], atol=1e-4))
    assert bool(jnp.allclose(ent, -jnp.mean(jnp.sum(probs_r * logp_r, axis=1)), atol=1e-4))
    assert bool(jnp.allclose(reg_list[0], jnp.mean(logits_r ** 2), atol=1e-4))

    # Stochastic path (sample=True, default returns): Gumbel-max categorical sample,
    # single output, softmax never computed.
    act_s = discrete_policy_forward(params, obs, k_samp, sample=True)
    jax.block_until_ready(act_s)
    assert act_s.shape == (BATCH, OUT_DIM)
    assert bool(jnp.allclose(jnp.sum(act_s, axis=1), 1.0))
    assert bool(jnp.all((act_s == 0.0) | (act_s == 1.0)))

    print("KERNEL_OK")
</pallas_src>

<mosaic_0001>
module attributes {stable_mosaic.version = 11 : i64} {
  func.func @_policy_kernel(%arg0: memref<8x32xf32, #tpu.memory_space<vmem>>, %arg1: memref<168x128xf32, #tpu.memory_space<vmem>>, %arg2: memref<8x18xf32, #tpu.memory_space<vmem>>, %arg3: memref<8x3xf32, #tpu.memory_space<vmem>>) attributes {dimension_semantics = [], scalar_prefetch = 0 : i64, scratch_operands = 0 : i64, tpu.core_type = #tpu.core_type<tc>} {
    %c0 = arith.constant 0 : index
    %c0_0 = arith.constant 0 : index
    %0 = vector.load %arg1[%c0, %c0_0] : memref<168x128xf32, #tpu.memory_space<vmem>>, vector<32x64xf32>
    %c32 = arith.constant 32 : index
    %c0_1 = arith.constant 0 : index
    %1 = vector.load %arg1[%c32, %c0_1] : memref<168x128xf32, #tpu.memory_space<vmem>>, vector<1x64xf32>
    %c33 = arith.constant 33 : index
    %c0_2 = arith.constant 0 : index
    %2 = vector.load %arg1[%c33, %c0_2] : memref<168x128xf32, #tpu.memory_space<vmem>>, vector<64x64xf32>
    %c97 = arith.constant 97 : index
    %c0_3 = arith.constant 0 : index
    %3 = vector.load %arg1[%c97, %c0_3] : memref<168x128xf32, #tpu.memory_space<vmem>>, vector<1x64xf32>
    %c98 = arith.constant 98 : index
    %c0_4 = arith.constant 0 : index
    %4 = vector.load %arg1[%c98, %c0_4] : memref<168x128xf32, #tpu.memory_space<vmem>>, vector<64x9xf32>
    %c162 = arith.constant 162 : index
    %c0_5 = arith.constant 0 : index
    %5 = vector.load %arg1[%c162, %c0_5] : memref<168x128xf32, #tpu.memory_space<vmem>>, vector<1x9xf32>
    %c0_6 = arith.constant 0 : index
    %c0_7 = arith.constant 0 : index
    %6 = vector.load %arg0[%c0_6, %c0_7] : memref<8x32xf32, #tpu.memory_space<vmem>>, vector<8x32xf32>
    %cst = arith.constant dense<0.000000e+00> : vector<8x64xf32>
    %7 = tpu.matmul %6, %0, %cst {dimension_numbers = #tpu.dot_dimension_numbers<[1], [0], [0], [1], [0, 0, 1, 1], [], []>} : vector<8x32xf32>, vector<32x64xf32>, vector<8x64xf32> -> vector<8x64xf32>
    %8 = vector.broadcast %1 : vector<1x64xf32> to vector<8x64xf32>
    %9 = arith.addf %7, %8 : vector<8x64xf32>
    %cst_8 = arith.constant 0.00999999977 : f32
    %10 = vector.broadcast %cst_8 : f32 to vector<8x64xf32>
    %11 = arith.mulf %10, %9 : vector<8x64xf32>
    %12 = arith.maximumf %9, %11 : vector<8x64xf32>
    %cst_9 = arith.constant dense<0.000000e+00> : vector<8x64xf32>
    %13 = tpu.matmul %12, %2, %cst_9 {dimension_numbers = #tpu.dot_dimension_numbers<[1], [0], [0], [1], [0, 0, 1, 1], [], []>} : vector<8x64xf32>, vector<64x64xf32>, vector<8x64xf32> -> vector<8x64xf32>
    %14 = vector.broadcast %3 : vector<1x64xf32> to vector<8x64xf32>
    %15 = arith.addf %13, %14 : vector<8x64xf32>
    %cst_10 = arith.constant 0.00999999977 : f32
    %16 = vector.broadcast %cst_10 : f32 to vector<8x64xf32>
    %17 = arith.mulf %16, %15 : vector<8x64xf32>
    %18 = arith.maximumf %15, %17 : vector<8x64xf32>
    %cst_11 = arith.constant dense<0.000000e+00> : vector<8x9xf32>
    %19 = tpu.matmul %18, %4, %cst_11 {dimension_numbers = #tpu.dot_dimension_numbers<[1], [0], [0], [1], [0, 0, 1, 1], [], []>} : vector<8x64xf32>, vector<64x9xf32>, vector<8x9xf32> -> vector<8x9xf32>
    %20 = vector.broadcast %5 : vector<1x9xf32> to vector<8x9xf32>
    %21 = arith.addf %19, %20 : vector<8x9xf32>
    %cst_12 = arith.constant dense<0xFF800000> : vector<8xf32>
    %22 = vector.multi_reduction <maximumf>, %21, %cst_12 [1] : vector<8x9xf32> to vector<8xf32>
    %23 = vector.shape_cast %22 : vector<8xf32> to vector<8x1xf32>
    %24 = vector.broadcast %23 : vector<8x1xf32> to vector<8x9xf32>
    %25 = arith.subf %21, %24 : vector<8x9xf32>
    %26 = math.exp %25 : vector<8x9xf32>
    %cst_13 = arith.constant dense<0.000000e+00> : vector<8xf32>
    %27 = vector.multi_reduction <add>, %26, %cst_13 [1] : vector<8x9xf32> to vector<8xf32>
    %28 = vector.shape_cast %27 : vector<8xf32> to vector<8x1xf32>
    %29 = vector.broadcast %28 : vector<8x1xf32> to vector<8x9xf32>
    %30 = arith.divf %26, %29 : vector<8x9xf32>
    %31 = math.log %28 : vector<8x1xf32>
    %32 = vector.broadcast %31 : vector<8x1xf32> to vector<8x9xf32>
    %33 = arith.subf %25, %32 : vector<8x9xf32>
    %34 = tpu.iota {dimensions = array<i32: 1>} : vector<8x9xi32>
    %cst_14 = arith.constant dense<0xFF800000> : vector<8xf32>
    %35 = vector.multi_reduction <maximumf>, %21, %cst_14 [1] : vector<8x9xf32> to vector<8xf32>
    %36 = vector.shape_cast %35 : vector<8xf32> to vector<8x1xf32>
    %37 = vector.broadcast %36 : vector<8x1xf32> to vector<8x9xf32>
    %38 = arith.cmpf oge, %21, %37 : vector<8x9xf32>
    %c9_i32 = arith.constant 9 : i32
    %39 = vector.broadcast %c9_i32 : i32 to vector<8x9xi32>
    %40 = arith.select %38, %34, %39 : vector<8x9xi1>, vector<8x9xi32>
    %cst_15 = arith.constant dense<2147483647> : vector<8xi32>
    %41 = vector.multi_reduction <minsi>, %40, %cst_15 [1] : vector<8x9xi32> to vector<8xi32>
    %42 = vector.shape_cast %41 : vector<8xi32> to vector<8x1xi32>
    %43 = vector.broadcast %42 : vector<8x1xi32> to vector<8x9xi32>
    %44 = arith.cmpi eq, %34, %43 : vector<8x9xi32>
    %45 = arith.extui %44 : vector<8x9xi1> to vector<8x9xi32>
    %46 = arith.sitofp %45 : vector<8x9xi32> to vector<8x9xf32>
    %47 = tpu.concatenate %46, %30 in 1 : vector<8x9xf32>, vector<8x9xf32> -> vector<8x18xf32>
    %c0_16 = arith.constant 0 : index
    %c0_17 = arith.constant 0 : index
    %48 = vector.load %arg2[%c0_16, %c0_17] : memref<8x18xf32, #tpu.memory_space<vmem>>, vector<8x18xf32>
    tpu.vector_store %arg2[%c0_16, %c0_17], %47 {strides = array<i32>} : memref<8x18xf32, #tpu.memory_space<vmem>>, vector<8x18xf32>,
    %49 = arith.mulf %46, %33 : vector<8x9xf32>
    %cst_18 = arith.constant dense<0.000000e+00> : vector<8xf32>
    %50 = vector.multi_reduction <add>, %49, %cst_18 [1] : vector<8x9xf32> to vector<8xf32>
    %51 = vector.shape_cast %50 : vector<8xf32> to vector<8x1xf32>
    %52 = arith.mulf %30, %33 : vector<8x9xf32>
    %cst_19 = arith.constant dense<0.000000e+00> : vector<8xf32>
    %53 = vector.multi_reduction <add>, %52, %cst_19 [1] : vector<8x9xf32> to vector<8xf32>
    %54 = vector.shape_cast %53 : vector<8xf32> to vector<8x1xf32>
    %cst_20 = arith.constant 0.000000e+00 : f32
    %55 = vector.broadcast %cst_20 : f32 to vector<8x1xf32>
    %56 = arith.subf %55, %54 : vector<8x1xf32>
    %cst_21 = arith.constant dense<0.000000e+00> : vector<1xf32>
    %57 = vector.multi_reduction <add>, %56, %cst_21 [0] : vector<8x1xf32> to vector<1xf32>
    %58 = vector.shape_cast %57 : vector<1xf32> to vector<1x1xf32>
    %cst_22 = arith.constant 8.000000e+00 : f32
    %59 = vector.broadcast %cst_22 : f32 to vector<1x1xf32>
    %60 = arith.divf %58, %59 : vector<1x1xf32>
    %61 = vector.shape_cast %60 : vector<1x1xf32> to vector<1x1xf32>
    %62 = vector.broadcast %61 : vector<1x1xf32> to vector<8x1xf32>
    %63 = arith.mulf %21, %21 : vector<8x9xf32>
    %cst_23 = arith.constant dense<0.000000e+00> : vector<8xf32>
    %64 = vector.multi_reduction <add>, %63, %cst_23 [1] : vector<8x9xf32> to vector<8xf32>
    %65 = vector.shape_cast %64 : vector<8xf32> to vector<8x1xf32>
    %cst_24 = arith.constant 9.000000e+00 : f32
    %66 = vector.broadcast %cst_24 : f32 to vector<8x1xf32>
    %67 = arith.divf %65, %66 : vector<8x1xf32>
    %cst_25 = arith.constant dense<0.000000e+00> : vector<1xf32>
    %68 = vector.multi_reduction <add>, %67, %cst_25 [0] : vector<8x1xf32> to vector<1xf32>
    %69 = vector.shape_cast %68 : vector<1xf32> to vector<1x1xf32>
    %cst_26 = arith.constant 8.000000e+00 : f32
    %70 = vector.broadcast %cst_26 : f32 to vector<1x1xf32>
    %71 = arith.divf %69, %70 : vector<1x1xf32>
    %72 = vector.shape_cast %71 : vector<1x1xf32> to vector<1x1xf32>
    %73 = vector.broadcast %72 : vector<1x1xf32> to vector<8x1xf32>
    %74 = tpu.concatenate %51, %62, %73 in 1 : vector<8x1xf32>, vector<8x1xf32>, vector<8x1xf32> -> vector<8x3xf32>
    %c0_27 = arith.constant 0 : index
    %c0_28 = arith.constant 0 : index
    %75 = vector.load %arg3[%c0_27, %c0_28] : memref<8x3xf32, #tpu.memory_space<vmem>>, vector<8x3xf32>
    tpu.vector_store %arg3[%c0_27, %c0_28], %74 {strides = array<i32>} : memref<8x3xf32, #tpu.memory_space<vmem>>, vector<8x3xf32>,
    return
  }
}

</mosaic_0001>

<llo_original>
// kernel: tpu_custom_call.1
$region0: #{tpu_custom_call.1}
  #allocation0 [shape = 'u32[]', space=smem, size = 0x4, offset = 0x4, fixed_abs, tag = 'smem constant byte address 0x4 - core index']
  #allocation1 [shape = 'u32[144,128]{1,0:T(1,128)}', space=vmem, size = 0x12000, scoped, tag = 'internal scratch']
  %s0 = inlined_call_operand.hbm [shape: f32[8,32], index: 0, kind: input, shape index: {}]
  %s1 = inlined_call_operand.hbm [shape: f32[168,128], index: 1, kind: input, shape index: {}]
  %s2 = inlined_call_operand.hbm [shape: f32[8,18], index: 2, kind: output, shape index: {0}]
  %s3 = inlined_call_operand.vmem [shape: f32[8,3], index: 3, kind: output, shape index: {1}]
  %4 = xla_tuple %s2, %s3
  %s5 = sld [smem:[#allocation0]]
  $region34: #{tpu_custom_call.1} parent=0
    _
  %s7 = ssub.s32 1, %s5
  %s8 = scalar_select 0, %s7, %s5
  $region1: #{tpu_custom_call.1} parent=0
    #allocation2 [shape = 'u8[4096]{0}', space=vmem, size = 0x1000, scoped, tag = 'input window, operand 0, single buffered']
    #allocation3 [shape = 's32[1]{0}', space=sflag, size = 0x4, scoped, tag = 'scoped memory for tpu_custom_call.1']
    #allocation4 [shape = 's32[1]{0}', space=sflag, size = 0x4, scoped, tag = 'scoped memory for tpu_custom_call.1']
    #allocation5 [shape = 'u8[86016]{0}', space=vmem, size = 0x15000, scoped, tag = 'input window, operand 1, single buffered']
    #allocation6 [shape = 's32[1]{0}', space=sflag, size = 0x4, scoped, tag = 'scoped memory for tpu_custom_call.1']
    #allocation7 [shape = 'u8[4096]{0}', space=vmem, size = 0x1000, scoped, tag = 'output window, operand 0, single buffered']
    %9 = vsyncpa [#allocation3], 0
    %10 = vsyncpa [#allocation6], 0
    %11 = vsyncpa [#allocation4], 0
    // Predicated region
    $region2: #{tpu_custom_call.1} parent=1 // pred_check
      _
    $region3: #{tpu_custom_call.1} parent=1 // pred_check_branch
      %13 = sbr.rel (0) target = $region5
    $region4: #{tpu_custom_call.1} parent=1 // pred_region
      %s15 = ssub.s32 128, 128
      %16 = vsyncadd [#allocation3], %s15
      %s18 = sshll.u32 [#allocation2], 4
      %s19 = int_to_ptr.vmem [resolvable:$true] %s18
      %21 = dma.hbm_to_vmem [thread:$0]  %s0, 128, %s19, [#allocation3]
    $region5: #{tpu_custom_call.1} parent=1 // pred_fallthru
      _
    // Predicated region
    $region6: #{tpu_custom_call.1} parent=1 // pred_check
      _
    $region7: #{tpu_custom_call.1} parent=1 // pred_check_branch
      %23 = sbr.rel (0) target = $region9
    $region8: #{tpu_custom_call.1} parent=1 // pred_region
      %s25 = ssub.s32 2688, 2688
      %26 = vsyncadd [#allocation6], %s25
      %s27 = sshll.u32 [#allocation5], 4
      %s28 = int_to_ptr.vmem [resolvable:$true] %s27
      %33 = dma.hbm_to_vmem [thread:$0]  %s1, 2688, %s28, [#allocation6], 128, 128, 8
    $region9: #{tpu_custom_call.1} parent=1 // pred_fallthru
      _
    // Predicated region
    $region10: #{tpu_custom_call.1} parent=1 // pred_check
      _
    $region11: #{tpu_custom_call.1} parent=1 // pred_check_branch
      %35 = sbr.rel (0) target = $region13
    $region12: #{tpu_custom_call.1} parent=1 // pred_region
      %36 = dma.done [#allocation3], 128
    $region13: #{tpu_custom_call.1} parent=1 // pred_fallthru
      _
    // Predicated region
    $region14: #{tpu_custom_call.1} parent=1 // pred_check
      _
    $region15: #{tpu_custom_call.1} parent=1 // pred_check_branch
      %38 = sbr.rel (0) target = $region17
    $region16: #{tpu_custom_call.1} parent=1 // pred_region
      %39 = dma.done [#allocation6], 2688
    $region17: #{tpu_custom_call.1} parent=1 // pred_fallthru
      _
    %v40 = vld [vmem:[#allocation5] sm:$0xff]
    %v41 = vld [vmem:[#allocation5 + $0x8] sm:$0xff]
    %v42 = vld [vmem:[#allocation5 + $0x10] sm:$0xff]
    %v43 = vld [vmem:[#allocation5 + $0x18] sm:$0xff]
    %v44 = vld [vmem:[#allocation5 + $0x20] sm:$0x1]
    %v45 = vld [vmem:[#allocation5 + $0x21] sm:$0xff]
    %v46 = vld [vmem:[#allocation5 + $0x29] sm:$0xff]
    %v47 = vld [vmem:[#allocation5 + $0x31] sm:$0xff]
    %v48 = vld [vmem:[#allocation5 + $0x39] sm:$0xff]
    %v49 = vld [vmem:[#allocation5 + $0x41] sm:$0xff]
    %v50 = vld [vmem:[#allocation5 + $0x49] sm:$0xff]
    %v51 = vld [vmem:[#allocation5 + $0x51] sm:$0xff]
    %v52 = vld [vmem:[#allocation5 + $0x59] sm:$0xff]
    %v53 = vld [vmem:[#allocation5 + $0x61] sm:$0x1]
    %v54 = vld [vmem:[#allocation5 + $0x62] sm:$0xff]
    %v55 = vld [vmem:[#allocation5 + $0x6a] sm:$0xff]
    %v56 = vld [vmem:[#allocation5 + $0x72] sm:$0xff]
    %v57 = vld [vmem:[#allocation5 + $0x7a] sm:$0xff]
    %v58 = vld [vmem:[#allocation5 + $0x82] sm:$0xff]
    %v59 = vld [vmem:[#allocation5 + $0x8a] sm:$0xff]
    %v60 = vld [vmem:[#allocation5 + $0x92] sm:$0xff]
    %v61 = vld [vmem:[#allocation5 + $0x9a] sm:$0xff]
    %v62 = vld [vmem:[#allocation5 + $0xa2] sm:$0x1]
    %v63 = vld [vmem:[#allocation2] sm:$0xff]
    %v64 = vlaneseq
    %v65 = vshrl.u32 %v64, 7
    %v66 = vsub.s32 0, %v65
    %v67 = vrot.slane %v44, %v66
    %vm68 = vcmask 261120
    %v70 = vsel %vm68, %v63, 0
    %72 = vmatprep.subr.mxu0 0.0
    %73 = vmatpush1.msra.mxu0 %v40
    %74 = vmatprep.subr.mxu0 0.0
    %75 = vmatpush1.msra.mxu0 %v41
    %76 = vmatprep.subr.mxu0 0.0
    %77 = vmatpush1.msra.mxu0 %v42
    %78 = vmatprep.subr.mxu0 0.0
    %79 = vmatpush1.msra.mxu0 %v43
    %80 = vmatprep.subr.mxu0 0.0
    %81 = vmatpush1.msra.mxu0 0.0
    %82 = vmatprep.subr.mxu0 0.0
    %83 = vmatpush1.msra.mxu0 0.0
    %84 = vmatprep.subr.mxu0 0.0
    %85 = vmatpush1.msra.mxu0 0.0
    %86 = vmatprep.subr.mxu0 0.0
    %87 = vmatpush1.msra.mxu0 0.0
    %88 = vmatprep.subr.mxu0 0.0
    %89 = vmatpush1.msra.mxu0 0.0
    %90 = vmatprep.subr.mxu0 0.0
    %91 = vmatpush1.msra.mxu0 0.0
    %92 = vmatprep.subr.mxu0 0.0
    %93 = vmatpush1.msra.mxu0 0.0
    %94 = vmatprep.subr.mxu0 0.0
    %95 = vmatpush1.msra.mxu0 0.0
    %96 = vmatprep.subr.mxu0 0.0
    %97 = vmatpush1.msra.mxu0 0.0
    %98 = vmatprep.subr.mxu0 0.0
    %99 = vmatpush1.msra.mxu0 0.0
    %100 = vmatprep.subr.mxu0 0.0
    %101 = vmatpush1.msra.mxu0 0.0
    %102 = vmatprep.subr.mxu0 0.0
    %103 = vmatpush1.msra.mxu0 0.0
    %104 = vmatprep.subr.mxu0 0.0
    %105 = vmatpush1.msra.mxu0 0.0
    %106 = vmatprep.subr.mxu0 0.0
    %107 = vmatpush1.msra.mxu0 0.0
    %108 = vmatprep.subr.mxu0 0.0
    %109 = vmatpush1.msra.mxu0 0.0
    %110 = vmatprep.subr.mxu0 0.0
    %111 = vmatpush1.msra.mxu0 0.0
    %112 = vmatprep.subr.mxu0 0.0
    %113 = vmatpush1.msra.mxu0 0.0
    %114 = vmatprep.subr.mxu0 0.0
    %115 = vmatpush1.msra.mxu0 0.0
    %116 = vmatprep.subr.mxu0 0.0
    %117 = vmatpush1.msra.mxu0 0.0
    %118 = vmatprep.subr.mxu0 0.0
    %119 = vmatpush1.msra.mxu0 0.0
    %120 = vmatprep.subr.mxu0 0.0
    %121 = vmatpush1.msra.mxu0 0.0
    %122 = vmatprep.subr.mxu0 0.0
    %123 = vmatpush1.msra.mxu0 0.0
    %124 = vmatprep.subr.mxu0 0.0
    %125 = vmatpush1.msra.mxu0 0.0
    %126 = vmatprep.subr.mxu0 0.0
    %127 = vmatpush1.msra.mxu0 0.0
    %128 = vmatprep.subr.mxu0 0.0
    %129 = vmatpush1.msra.mxu0 0.0
    %130 = vmatprep.subr.mxu0 0.0
    %131 = vmatpush1.msra.mxu0 0.0
    %132 = vmatprep.subr.mxu0 0.0
    %133 = vmatpush1.msra.mxu0 0.0
    %134 = vmatprep.subr.mxu0 0.0
    %135 = vmatpush1.msra.mxu0 0.0
    %136 = vmatprep.mubr.f32.mxu0 0.0
    %137 = vmatmul.mubr.f32.gmra.mrb[0].mxu0 %v70
    %v138 = vpop.f32.mrb[0].mxu0
    %v139 = vadd.f32 %v67, %v138
    %v140 = vpop.f32.mrb[0].mxu0
    %141 = vdwg.mxu0
    %v142 = vmul.f32 %v139, 0.01
    %v143 = vmax.f32 %v139, %v142
    %v144 = vlaneseq
    %v145 = vshrl.u32 %v144, 7
    %v146 = vsub.s32 0, %v145
    %v147 = vrot.slane %v53, %v146
    %vm148 = vcmask 523264
    %v150 = vsel %vm148, %v143, 0
    %152 = vmatprep.subr.mxu0 0.0
    %153 = vmatpush1.msra.mxu0 %v45
    %154 = vmatprep.subr.mxu0 0.0
    %155 = vmatpush1.msra.mxu0 %v46
    %156 = vmatprep.subr.mxu0 0.0
    %157 = vmatpush1.msra.mxu0 %v47
    %158 = vmatprep.subr.mxu0 0.0
    %159 = vmatpush1.msra.mxu0 %v48
    %160 = vmatprep.subr.mxu0 0.0
    %161 = vmatpush1.msra.mxu0 %v49
    %162 = vmatprep.subr.mxu0 0.0
    %163 = vmatpush1.msra.mxu0 %v50
    %164 = vmatprep.subr.mxu0 0.0
    %165 = vmatpush1.msra.mxu0 %v51
    %166 = vmatprep.subr.mxu0 0.0
    %167 = vmatpush1.msra.mxu0 %v52
    %168 = vmatprep.subr.mxu0 0.0
    %169 = vmatpush1.msra.mxu0 0.0
    %170 = vmatprep.subr.mxu0 0.0
    %171 = vmatpush1.msra.mxu0 0.0
    %172 = vmatprep.subr.mxu0 0.0
    %173 = vmatpush1.msra.mxu0 0.0
    %174 = vmatprep.subr.mxu0 0.0
    %175 = vmatpush1.msra.mxu0 0.0
    %176 = vmatprep.subr.mxu0 0.0
    %177 = vmatpush1.msra.mxu0 0.0
    %178 = vmatprep.subr.mxu0 0.0
    %179 = vmatpush1.msra.mxu0 0.0
    %180 = vmatprep.subr.mxu0 0.0
    %181 = vmatpush1.msra.mxu0 0.0
    %182 = vmatprep.subr.mxu0 0.0
    %183 = vmatpush1.msra.mxu0 0.0
    %184 = vmatprep.subr.mxu0 0.0
    %185 = vmatpush1.msra.mxu0 0.0
    %186 = vmatprep.subr.mxu0 0.0
    %187 = vmatpush1.msra.mxu0 0.0
    %188 = vmatprep.subr.mxu0 0.0
    %189 = vmatpush1.msra.mxu0 0.0
    %190 = vmatprep.subr.mxu0 0.0
    %191 = vmatpush1.msra.mxu0 0.0
    %192 = vmatprep.subr.mxu0 0.0
    %193 = vmatpush1.msra.mxu0 0.0
    %194 = vmatprep.subr.mxu0 0.0
    %195 = vmatpush1.msra.mxu0 0.0
    %196 = vmatprep.subr.mxu0 0.0
    %197 = vmatpush1.msra.mxu0 0.0
    %198 = vmatprep.subr.mxu0 0.0
    %199 = vmatpush1.msra.mxu0 0.0
    %200 = vmatprep.subr.mxu0 0.0
    %201 = vmatpush1.msra.mxu0 0.0
    %202 = vmatprep.subr.mxu0 0.0
    %203 = vmatpush1.msra.mxu0 0.0
    %204 = vmatprep.subr.mxu0 0.0
    %205 = vmatpush1.msra.mxu0 0.0
    %206 = vmatprep.subr.mxu0 0.0
    %207 = vmatpush1.msra.mxu0 0.0
    %208 = vmatprep.subr.mxu0 0.0
    %209 = vmatpush1.msra.mxu0 0.0
    %210 = vmatprep.subr.mxu0 0.0
    %211 = vmatpush1.msra.mxu0 0.0
    %212 = vmatprep.subr.mxu0 0.0
    %213 = vmatpush1.msra.mxu0 0.0
    %214 = vmatprep.subr.mxu0 0.0
    %215 = vmatpush1.msra.mxu0 0.0
    %216 = vmatprep.mubr.f32.mxu0 0.0
    %217 = vmatmul.mubr.f32.gmra.mrb[0].mxu0 %v150
    %v218 = vpop.f32.mrb[0].mxu0
    %v219 = vadd.f32 %v147, %v218
    %v220 = vpop.f32.mrb[0].mxu0
    %221 = vdwg.mxu0
    %v222 = vmul.f32 %v219, 0.01
    %v223 = vmax.f32 %v219, %v222
    %v224 = vlaneseq
    %v225 = vshrl.u32 %v224, 7
    %v226 = vsub.s32 0, %v225
    %v227 = vrot.slane %v62, %v226
    %v229 = vsel %vm148, %v223, 0
    %231 = vmatprep.subr.mxu0 0.0
    %232 = vmatpush1.msra.mxu0 %v54
    %233 = vmatprep.subr.mxu0 0.0
    %234 = vmatpush1.msra.mxu0 %v55
    %235 = vmatprep.subr.mxu0 0.0
    %236 = vmatpush1.msra.mxu0 %v56
    %237 = vmatprep.subr.mxu0 0.0
    %238 = vmatpush1.msra.mxu0 %v57
    %239 = vmatprep.subr.mxu0 0.0
    %240 = vmatpush1.msra.mxu0 %v58
    %241 = vmatprep.subr.mxu0 0.0
    %242 = vmatpush1.msra.mxu0 %v59
    %243 = vmatprep.subr.mxu0 0.0
    %244 = vmatpush1.msra.mxu0 %v60
    %245 = vmatprep.subr.mxu0 0.0
    %246 = vmatpush1.msra.mxu0 %v61
    %247 = vmatprep.subr.mxu0 0.0
    %248 = vmatpush1.msra.mxu0 0.0
    %249 = vmatprep.subr.mxu0 0.0
    %250 = vmatpush1.msra.mxu0 0.0
    %251 = vmatprep.subr.mxu0 0.0
    %252 = vmatpush1.msra.mxu0 0.0
    %253 = vmatprep.subr.mxu0 0.0
    %254 = vmatpush1.msra.mxu0 0.0
    %255 = vmatprep.subr.mxu0 0.0
    %256 = vmatpush1.msra.mxu0 0.0
    %257 = vmatprep.subr.mxu0 0.0
    %258 = vmatpush1.msra.mxu0 0.0
    %259 = vmatprep.subr.mxu0 0.0
    %260 = vmatpush1.msra.mxu0 0.0
    %261 = vmatprep.subr.mxu0 0.0
    %262 = vmatpush1.msra.mxu0 0.0
    %263 = vmatprep.subr.mxu0 0.0
    %264 = vmatpush1.msra.mxu0 0.0
    %265 = vmatprep.subr.mxu0 0.0
    %266 = vmatpush1.msra.mxu0 0.0
    %267 = vmatprep.subr.mxu0 0.0
    %268 = vmatpush1.msra.mxu0 0.0
    %269 = vmatprep.subr.mxu0 0.0
    %270 = vmatpush1.msra.mxu0 0.0
    %271 = vmatprep.subr.mxu0 0.0
    %272 = vmatpush1.msra.mxu0 0.0
    %273 = vmatprep.subr.mxu0 0.0
    %274 = vmatpush1.msra.mxu0 0.0
    %275 = vmatprep.subr.mxu0 0.0
    %276 = vmatpush1.msra.mxu0 0.0
    %277 = vmatprep.subr.mxu0 0.0
    %278 = vmatpush1.msra.mxu0 0.0
    %279 = vmatprep.subr.mxu0 0.0
    %280 = vmatpush1.msra.mxu0 0.0
    %281 = vmatprep.subr.mxu0 0.0
    %282 = vmatpush1.msra.mxu0 0.0
    %283 = vmatprep.subr.mxu0 0.0
    %284 = vmatpush1.msra.mxu0 0.0
    %285 = vmatprep.subr.mxu0 0.0
    %286 = vmatpush1.msra.mxu0 0.0
    %287 = vmatprep.subr.mxu0 0.0
    %288 = vmatpush1.msra.mxu0 0.0
    %289 = vmatprep.subr.mxu0 0.0
    %290 = vmatpush1.msra.mxu0 0.0
    %291 = vmatprep.subr.mxu0 0.0
    %292 = vmatpush1.msra.mxu0 0.0
    %293 = vmatprep.subr.mxu0 0.0
    %294 = vmatpush1.msra.mxu0 0.0
    %295 = vmatprep.mubr.f32.mxu0 0.0
    %296 = vmatmul.mubr.f32.gmra.mrb[0].mxu0 %v229
    %v297 = vpop.f32.mrb[0].mxu0
    %v298 = vadd.f32 %v227, %v297
    %v299 = vpop.f32.mrb[0].mxu0
    %300 = vdwg.mxu0
    %vm301 = vcmask 72704
    %v302 = vsel %vm301, %v298, -inf
    %303 = vmax.xlane.f32.xlu0 %v302
    %v304 = vpop.xlane.xlu0 %303
    %v305 = vsub.f32 %v298, %v304
    %v306 = vmul.f32 %v305, 1.442695
    %v307 = vpow.pop %v306
    %v308 = vsel %vm301, %v307, 0.0
    %309 = vadd.xlane.f32.xlu0 %v308
    %v310 = vpop.xlane.xlu0 %309
    %v311 = vrcp.pop %v310
    %v312 = vmul.f32 %v307, %v311
    %v313 = vlog2.pop %v310
    %v314 = vmul.f32 %v313, 0.6931472
    %v315 = vsub.f32 %v305, %v314
    %v316 = vlaneseq
    %v317 = vand.u32 %v316, 127
    %vm318 = vcmp.ge.f32.partialorder %v298, %v304
    %v319 = vsel %vm318, %v317, 9
    %v320 = vsel %vm301, %v319, 2147483647
    %v321 = vand.u32 %v320, 65535
    %v322 = vshra.s32 %v320, 16
    %v323 = vcvt.s32.f32 %v321
    %v324 = vcvt.s32.f32 %v322
    %325 = vmin.xlane.f32.xlu0 %v324
    %v326 = vpop.xlane.xlu0 %325
    %vm327 = vcmp.eq.f32.partialorder %v324, %v326
    %v328 = vsel %vm327, %v323, inf
    %329 = vmin.xlane.f32.xlu0 %v328
    %v330 = vpop.xlane.xlu0 %329
    %v331 = vcvt.f32.s32 %v330
    %v332 = vcvt.f32.s32 %v326
    %v333 = vshll.u32 %v332, 16
    %v334 = vadd.s32 %v333, %v331
    %vm335 = vcmp.eq.s32.totalorder %v317, %v334
    %v336 = vsel %vm335, 1, 0
    %v337 = vcvt.s32.f32 %v336
    %339 = vrot.lane.b32.xlu0 %v312, 9
    %v340 = vpop.permute.xlu0 %339
    %v342 = vsel %vm301, %v337, %v340
    %vm343 = vcmask 146432
    %344 = vst.msk [vmem:[#allocation7] sm:$0xff] %vm343, %v342
    %v345 = vmul.f32 %v337, %v315
    %v346 = vsel %vm301, %v345, 0.0
    %347 = vadd.xlane.f32.xlu0 %v346
    %v348 = vpop.xlane.xlu0 %347
    %v349 = vmul.f32 %v312, %v315
    %v350 = vsel %vm301, %v349, 0.0
    %351 = vadd.xlane.f32.xlu0 %v350
    %v352 = vpop.xlane.xlu0 %351
    %v353 = vsub.f32 0.0, %v352
    %v354 = vrot.slane %v353, 4
    %v355 = vadd.f32 %v353, %v354
    %v356 = vrot.slane %v355, 2
    %v357 = vadd.f32 %v355, %v356
    %v358 = vrot.slane %v357, 1
    %v359 = vadd.f32 %v357, %v358
    %v360 = vrcp.pop 8.0
    %v361 = vmul.f32 %v359, %v360
    %v362 = vmul.f32 %v298, %v298
    %v363 = vsel %vm301, %v362, 0.0
    %364 = vadd.xlane.f32.xlu0 %v363
    %v365 = vpop.xlane.xlu0 %364
    %v366 = vrcp.pop 9.0
    %v367 = vmul.f32 %v365, %v366
    %v368 = vrot.slane %v367, 4
    %v369 = vadd.f32 %v367, %v368
    %v370 = vrot.slane %v369, 2
    %v371 = vadd.f32 %v369, %v370
    %v372 = vrot.slane %v371, 1
    %v373 = vadd.f32 %v371, %v372
    %v374 = vmul.f32 %v373, %v360
    %vm375 = vcmask 7168
    %v376 = vsel %vm375, %v348, %v361
    %vm377 = vcmask 15360
    %v378 = vsel %vm377, %v376, %v374
    %vm379 = vcmask 23552
    %380 = vst.msk [vmem:[%s3] sm:$0xff] %vm379, %v378
    // Predicated region
    $region18: #{tpu_custom_call.1} parent=1 // pred_check
      _
    $region19: #{tpu_custom_call.1} parent=1 // pred_check_branch
      %382 = sbr.rel (0) target = $region21
    $region20: #{tpu_custom_call.1} parent=1 // pred_region
      %s384 = ssub.s32 128, 128
      %385 = vsyncadd [#allocation4], %s384
      %s387 = sshll.u32 [#allocation7], 4
      %s388 = int_to_ptr.vmem [resolvable:$true] %s387
      %390 = dma.vmem_to_hbm [thread:$0]  %s388, 128, %s2, [#allocation4]
    $region21: #{tpu_custom_call.1} parent=1 // pred_fallthru
      _
    // Predicated region
    $region22: #{tpu_custom_call.1} parent=1 // pred_check
      _
    $region23: #{tpu_custom_call.1} parent=1 // pred_check_branch
      %392 = sbr.rel (0) target = $region25
    $region24: #{tpu_custom_call.1} parent=1 // pred_region
      _
    $region25: #{tpu_custom_call.1} parent=1 // pred_fallthru
      _
    // Predicated region
    $region26: #{tpu_custom_call.1} parent=1 // pred_check
      _
    $region27: #{tpu_custom_call.1} parent=1 // pred_check_branch
      %394 = sbr.rel (0) target = $region29
    $region28: #{tpu_custom_call.1} parent=1 // pred_region
      %395 = dma.done [#allocation4], 128
    $region29: #{tpu_custom_call.1} parent=1 // pred_fallthru
      _
    // Predicated region
    $region30: #{tpu_custom_call.1} parent=1 // pred_check
      _
    $region31: #{tpu_custom_call.1} parent=1 // pred_check_branch
      %397 = sbr.rel (0) target = $region33
    $region32: #{tpu_custom_call.1} parent=1 // pred_region
      _
    $region33: #{tpu_custom_call.1} parent=1 // pred_fallthru
      _
    %398 = vsyncpa [#allocation3], 1
    %399 = vsyncpa [#allocation6], 1
    %400 = vsyncpa [#allocation4], 1

</llo_original>
